<compile_context>
chip_gen: v5e
topology: v5e:2x2
jax: 0.10.0
libtpu: 0.0.40
codegen_flags: <defaults>
</compile_context>

<pallas_src>
import functools

import jax
import jax.numpy as jnp
from jax import lax
from jax.experimental import pallas as pl
from jax.experimental.pallas import tpu as pltpu

_LANES = 128   # vreg lane width
_SUB = 8       # vreg sublane count (f32)


def _masked_mse_kernel(x_ref, t_ref, m_ref, out_ref, acc_ref, *,
                       total_rows, needs_mask):
    """Accumulate per-lane partial sums of mask*(x-t)^2 and mask."""
    c = pl.program_id(0)      # split index (parallel across TCs on v7x)
    i = pl.program_id(1)      # reduction step within this split
    nsteps = pl.num_programs(1)

    @pl.when(i == 0)
    def _():
        acc_ref[...] = jnp.zeros_like(acc_ref)

    block_rows = x_ref.shape[0]

    def accumulate(sq, w):
        # Deferred XLU reduce: fold the block into the (8,128) vreg-shaped
        # accumulator with pure sublane-aligned VPU adds.  The reshape is
        # layout-preserving (sublane grouping only); no relayout expected.
        full = (block_rows // _SUB) * _SUB
        if full == block_rows:
            g = block_rows // _SUB
            acc_ref[0] += sq.reshape(g, _SUB, _LANES).sum(axis=0)
            acc_ref[1] += w.reshape(g, _SUB, _LANES).sum(axis=0)
            return
        # Tiny single-block input whose row count isn't a multiple of 8.
        if full:
            g = full // _SUB
            acc_ref[0] += sq[:full, :].reshape(g, _SUB, _LANES).sum(axis=0)
            acc_ref[1] += w[:full, :].reshape(g, _SUB, _LANES).sum(axis=0)
        tail = block_rows - full
        acc_ref[0, 0:tail, :] += sq[full:, :]
        acc_ref[1, 0:tail, :] += w[full:, :]

    x = x_ref[...].astype(jnp.float32)
    t = t_ref[...].astype(jnp.float32)
    m = m_ref[...].astype(jnp.float32)
    d = x - t

    if not needs_mask:
        # Statically known: every block is fully valid.
        accumulate(m * d * d, m)
    else:
        # Gate the masking work per step: only the ragged last block (or an
        # over-provisioned clamped step of an uneven split) pays for the
        # iota/compare/select; interior blocks take the fast path.
        row0 = (c * nsteps + i) * block_rows          # nominal, NOT clamped
        is_full_block = row0 + block_rows <= total_rows

        @pl.when(is_full_block)
        def _():
            accumulate(m * d * d, m)

        @pl.when(jnp.logical_not(is_full_block))
        def _():
            row_ids = row0 + lax.broadcasted_iota(
                jnp.int32, (block_rows, _LANES), 0)
            valid = row_ids < total_rows
            dv = jnp.where(valid, d, 0.0)   # also kills NaN/Inf DMA garbage
            w = jnp.where(valid, m, 0.0)
            accumulate(w * dv * dv, w)

    @pl.when(i == nsteps - 1)
    def _():
        out_ref[...] = acc_ref[...]


def _device_config():
    """Per-generation defaults: TC split count, stream budget, VMEM limit."""
    try:
        kind = jax.devices()[0].device_kind.lower()
    except Exception:  # pragma: no cover - defensive
        kind = ""
    if "v7" in kind:
        # 2 TensorCores per chip, 64 MiB VMEM per TC, 3.2 TB/s HBM.
        return dict(io_budget=36 << 20, vmem_limit=48 << 20,
                    num_splits=2, core_parallel=True)
    if any(t in kind for t in ("v4", "v5", "v6")):
        # Single TensorCore, 128 MiB VMEM: spend it on bigger blocks.
        return dict(io_budget=72 << 20, vmem_limit=96 << 20,
                    num_splits=1, core_parallel=False)
    # Unknown chip: conservative, previously validated budget.
    return dict(io_budget=22 << 20, vmem_limit=32 << 20,
                num_splits=1, core_parallel=False)


def multi_masked_mse_loss(inputs, target, mask, *,
                          block_rows=None, num_splits=None):
    """Scalar masked MSE: sum(mask * (inputs - target)^2) / sum(mask)."""
    assert inputs.shape == target.shape == mask.shape

    if mask.dtype == jnp.bool_:
        mask = mask.astype(jnp.int8)   # keep the mask stream narrow (1 B/elem)

    cfg = _device_config()
    if num_splits is None:
        num_splits = cfg["num_splits"]

    n = inputs.size
    x = inputs.reshape(-1)
    t = target.reshape(-1)
    m = mask.reshape(-1)

    # Lane-dense (rows, 128) view.  A pad (full copy of the three streams) is
    # needed only when n isn't a multiple of 128; padded elements have
    # x = t = mask = 0 so they contribute nothing to either sum.  Ragged row
    # counts are handled in-kernel, so no padding up to 8-row chunks.
    # TODO(synk): a manual-DMA ragged tail would avoid this copy entirely for
    # very large non-128-multiple inputs; skipped for simplicity.
    rem = (-n) % _LANES
    if rem:
        x = jnp.pad(x, (0, rem))
        t = jnp.pad(t, (0, rem))
        m = jnp.pad(m, (0, rem))
    rows = (n + rem) // _LANES

    x2 = x.reshape(rows, _LANES)
    t2 = t.reshape(rows, _LANES)
    m2 = m.reshape(rows, _LANES)

    # Block rows sized so double-buffered input streams plus ~6 f32-sized
    # temporaries fit the per-generation budget; larger blocks amortize the
    # ~0.35 us per-grid-step overhead (matters most at v7x's 3.2 TB/s).
    if block_rows is None:
        bytes_per_row = (2 * _LANES * (x2.dtype.itemsize + t2.dtype.itemsize
                                       + m2.dtype.itemsize)
                         + 6 * 4 * _LANES)
        block_rows = max(_SUB,
                         (cfg["io_budget"] // bytes_per_row) // _SUB * _SUB)

    blk = min(block_rows, rows)              # mult. of 8 unless blk == rows
    total_blocks = pl.cdiv(rows, blk)
    splits = max(1, min(num_splits, total_blocks))
    steps = pl.cdiv(total_blocks, splits)

    def in_map(c, i):
        # Clamp so over-provisioned (split, step) pairs never DMA out of
        # bounds; the kernel zeroes their contribution via the nominal index.
        return (jnp.minimum(c * steps + i, total_blocks - 1), 0)

    in_spec = pl.BlockSpec((blk, _LANES), in_map)
    out_spec = pl.BlockSpec((None, 2, _SUB, _LANES),
                            lambda c, i: (c, 0, 0, 0))

    kernel = functools.partial(
        _masked_mse_kernel,
        total_rows=rows,
        needs_mask=(splits * steps * blk != rows),
    )

    if splits > 1 and cfg["core_parallel"]:
        sem0 = pltpu.CORE_PARALLEL      # shard axis 0 across the two TCs (v7x)
    elif splits > 1:
        sem0 = pltpu.PARALLEL
    else:
        sem0 = pltpu.ARBITRARY

    partials = pl.pallas_call(
        kernel,
        out_shape=jax.ShapeDtypeStruct((splits, 2, _SUB, _LANES), jnp.float32),
        grid_spec=pltpu.PrefetchScalarGridSpec(
            num_scalar_prefetch=0,
            grid=(splits, steps),
            in_specs=[in_spec, in_spec, in_spec],
            out_specs=out_spec,
            scratch_shapes=[pltpu.VMEM((2, _SUB, _LANES), jnp.float32)],
        ),
        compiler_params=pltpu.CompilerParams(
            dimension_semantics=(sem0, pltpu.ARBITRARY),
            vmem_limit_bytes=cfg["vmem_limit"],
        ),
    )(x2, t2, m2)

    num = jnp.sum(partials[:, 0])
    den = jnp.sum(partials[:, 1])
    # All-zero mask -> return 0 instead of NaN.
    return jnp.where(den > 0.0, num / jnp.maximum(den, 1e-30), 0.0)


if __name__ == "__main__":
    key = jax.random.PRNGKey(0)

    def ref_loss(x, t, m):
        xf = x.astype(jnp.float32)
        tf = t.astype(jnp.float32)
        mf = m.astype(jnp.float32)
        return jnp.sum(mf * (xf - tf) ** 2) / jnp.sum(mf)

    # Primary small case (NCHW, matching the PyTorch convention).
    k1, k2, k3, key = jax.random.split(key, 4)
    B, C, H, W = 2, 4, 16, 16
    x = jax.random.normal(k1, (B, C, H, W), dtype=jnp.float32)
    tgt = jax.random.normal(k2, (B, C, H, W), dtype=jnp.float32)
    mask = (jax.random.uniform(k3, (B, C, H, W)) > 0.5).astype(jnp.float32)
    loss = jax.block_until_ready(multi_masked_mse_loss(x, tgt, mask))
    ref = ref_loss(x, tgt, mask)
    assert jnp.allclose(loss, ref, rtol=1e-5, atol=1e-6), (loss, ref)

    # Ragged element count (exercises the small 128-pad + sub-8-row path).
    k1, k2, k3, key = jax.random.split(key, 4)
    shp = (2, 3, 7, 9)
    x = jax.random.normal(k1, shp, dtype=jnp.float32)
    tgt = jax.random.normal(k2, shp, dtype=jnp.float32)
    mask = (jax.random.uniform(k3, shp) > 0.3).astype(jnp.float32)
    loss = jax.block_until_ready(multi_masked_mse_loss(x, tgt, mask))
    ref = ref_loss(x, tgt, mask)
    assert jnp.allclose(loss, ref, rtol=1e-5, atol=1e-6), (loss, ref)

    # Larger case in bf16 (native-dtype streaming, no padding).
    k1, k2, k3, key = jax.random.split(key, 4)
    shp = (2, 6, 256, 512)
    x = jax.random.normal(k1, shp, dtype=jnp.bfloat16)
    tgt = jax.random.normal(k2, shp, dtype=jnp.bfloat16)
    mask = (jax.random.uniform(k3, shp) > 0.5).astype(jnp.bfloat16)
    loss = jax.block_until_ready(multi_masked_mse_loss(x, tgt, mask))
    ref = ref_loss(x, tgt, mask)
    assert jnp.allclose(loss, ref, rtol=1e-4, atol=1e-5), (loss, ref)

    # Bool mask -> int8 narrow-mask streaming path.
    k1, k2, k3, key = jax.random.split(key, 4)
    shp = (2, 4, 32, 64)
    x = jax.random.normal(k1, shp, dtype=jnp.float32)
    tgt = jax.random.normal(k2, shp, dtype=jnp.float32)
    mask_b = jax.random.uniform(k3, shp) > 0.5
    loss = jax.block_until_ready(multi_masked_mse_loss(x, tgt, mask_b))
    ref = ref_loss(x, tgt, mask_b)
    assert jnp.allclose(loss, ref, rtol=1e-5, atol=1e-6), (loss, ref)

    print("KERNEL_OK")
</pallas_src>

<mosaic_0001>
module attributes {stable_mosaic.version = 11 : i64} {
  func.func @_masked_mse_kernel(%arg0: i32, %arg1: i32, %arg2: memref<16x128xf32, #tpu.memory_space<vmem>>, %arg3: memref<16x128xf32, #tpu.memory_space<vmem>>, %arg4: memref<16x128xf32, #tpu.memory_space<vmem>>, %arg5: memref<1x2x8x128xf32, #tpu.memory_space<vmem>>, %arg6: memref<2x8x128xf32, #tpu.memory_space<vmem>>) attributes {dimension_semantics = [#tpu.dimension_semantics<arbitrary>, #tpu.dimension_semantics<arbitrary>], iteration_bounds = array<i64: 1, 1>, scalar_prefetch = 0 : i64, scratch_operands = 1 : i64, tpu.core_type = #tpu.core_type<tc>, window_params = [{transform_indices = @transform_0, window_bounds = array<i64: 16, 128>}, {transform_indices = @transform_1, window_bounds = array<i64: 16, 128>}, {transform_indices = @transform_2, window_bounds = array<i64: 16, 128>}, {transform_indices = @transform_3, window_bounds = array<i64: 1, 2, 8, 128>}]} {
    %c0_i32 = arith.constant 0 : i32
    %0 = arith.cmpi eq, %arg1, %c0_i32 : i32
    %1 = arith.extui %0 : i1 to i32
    %c0_i32_0 = arith.constant 0 : i32
    %2 = arith.cmpi ne, %1, %c0_i32_0 : i32
    scf.if %2 {
      %cst_20 = arith.constant 0.000000e+00 : f32
      %28 = vector.broadcast %cst_20 : f32 to vector<2x8x128xf32>
      %c0_21 = arith.constant 0 : index
      %c0_22 = arith.constant 0 : index
      %c0_23 = arith.constant 0 : index
      %29 = vector.load %arg6[%c0_21, %c0_22, %c0_23] : memref<2x8x128xf32, #tpu.memory_space<vmem>>, vector<2x8x128xf32>
      tpu.vector_store %arg6[%c0_21, %c0_22, %c0_23], %28 {strides = array<i32>} : memref<2x8x128xf32, #tpu.memory_space<vmem>>, vector<2x8x128xf32>,
    } else {
    }
    %c0 = arith.constant 0 : index
    %c0_1 = arith.constant 0 : index
    %3 = vector.load %arg2[%c0, %c0_1] : memref<16x128xf32, #tpu.memory_space<vmem>>, vector<16x128xf32>
    %c0_2 = arith.constant 0 : index
    %c0_3 = arith.constant 0 : index
    %4 = vector.load %arg3[%c0_2, %c0_3] : memref<16x128xf32, #tpu.memory_space<vmem>>, vector<16x128xf32>
    %c0_4 = arith.constant 0 : index
    %c0_5 = arith.constant 0 : index
    %5 = vector.load %arg4[%c0_4, %c0_5] : memref<16x128xf32, #tpu.memory_space<vmem>>, vector<16x128xf32>
    %6 = arith.subf %3, %4 : vector<16x128xf32>
    %7 = arith.mulf %5, %6 : vector<16x128xf32>
    %8 = arith.mulf %7, %6 : vector<16x128xf32>
    %c0_6 = arith.constant 0 : index
    %c0_7 = arith.constant 0 : index
    %c0_8 = arith.constant 0 : index
    %9 = vector.load %arg6[%c0_6, %c0_7, %c0_8] : memref<2x8x128xf32, #tpu.memory_space<vmem>>, vector<1x8x128xf32>
    %10 = vector.shape_cast %9 : vector<1x8x128xf32> to vector<8x128xf32>
    %11 = vector.shape_cast %8 : vector<16x128xf32> to vector<2x8x128xf32>
    %cst = arith.constant dense<0.000000e+00> : vector<8x128xf32>
    %12 = vector.multi_reduction <add>, %11, %cst [0] : vector<2x8x128xf32> to vector<8x128xf32>
    %13 = arith.addf %10, %12 : vector<8x128xf32>
    %c0_9 = arith.constant 0 : index
    %c0_10 = arith.constant 0 : index
    %c0_11 = arith.constant 0 : index
    %14 = vector.load %arg6[%c0_9, %c0_10, %c0_11] : memref<2x8x128xf32, #tpu.memory_space<vmem>>, vector<1x8x128xf32>
    %15 = vector.shape_cast %14 : vector<1x8x128xf32> to vector<8x128xf32>
    %16 = vector.shape_cast %13 : vector<8x128xf32> to vector<1x8x128xf32>
    tpu.vector_store %arg6[%c0_9, %c0_10, %c0_11], %16 {strides = array<i32>} : memref<2x8x128xf32, #tpu.memory_space<vmem>>, vector<1x8x128xf32>,
    %c1 = arith.constant 1 : index
    %c0_12 = arith.constant 0 : index
    %c0_13 = arith.constant 0 : index
    %17 = vector.load %arg6[%c1, %c0_12, %c0_13] : memref<2x8x128xf32, #tpu.memory_space<vmem>>, vector<1x8x128xf32>
    %18 = vector.shape_cast %17 : vector<1x8x128xf32> to vector<8x128xf32>
    %19 = vector.shape_cast %5 : vector<16x128xf32> to vector<2x8x128xf32>
    %cst_14 = arith.constant dense<0.000000e+00> : vector<8x128xf32>
    %20 = vector.multi_reduction <add>, %19, %cst_14 [0] : vector<2x8x128xf32> to vector<8x128xf32>
    %21 = arith.addf %18, %20 : vector<8x128xf32>
    %c1_15 = arith.constant 1 : index
    %c0_16 = arith.constant 0 : index
    %c0_17 = arith.constant 0 : index
    %22 = vector.load %arg6[%c1_15, %c0_16, %c0_17] : memref<2x8x128xf32, #tpu.memory_space<vmem>>, vector<1x8x128xf32>
    %23 = vector.shape_cast %22 : vector<1x8x128xf32> to vector<8x128xf32>
    %24 = vector.shape_cast %21 : vector<8x128xf32> to vector<1x8x128xf32>
    tpu.vector_store %arg6[%c1_15, %c0_16, %c0_17], %24 {strides = array<i32>} : memref<2x8x128xf32, #tpu.memory_space<vmem>>, vector<1x8x128xf32>,
    %c0_i32_18 = arith.constant 0 : i32
    %25 = arith.cmpi eq, %arg1, %c0_i32_18 : i32
    %26 = arith.extui %25 : i1 to i32
    %c0_i32_19 = arith.constant 0 : i32
    %27 = arith.cmpi ne, %26, %c0_i32_19 : i32
    scf.if %27 {
      %c0_20 = arith.constant 0 : index
      %c0_21 = arith.constant 0 : index
      %c0_22 = arith.constant 0 : index
      %28 = vector.load %arg6[%c0_20, %c0_21, %c0_22] : memref<2x8x128xf32, #tpu.memory_space<vmem>>, vector<2x8x128xf32>
      %c0_23 = arith.constant 0 : index
      %c0_24 = arith.constant 0 : index
      %c0_25 = arith.constant 0 : index
      %c0_26 = arith.constant 0 : index
      %29 = vector.load %arg5[%c0_23, %c0_24, %c0_25, %c0_26] : memref<1x2x8x128xf32, #tpu.memory_space<vmem>>, vector<1x2x8x128xf32>
      %30 = vector.shape_cast %29 : vector<1x2x8x128xf32> to vector<2x8x128xf32>
      %31 = vector.shape_cast %28 : vector<2x8x128xf32> to vector<1x2x8x128xf32>
      tpu.vector_store %arg5[%c0_23, %c0_24, %c0_25, %c0_26], %31 {strides = array<i32>} : memref<1x2x8x128xf32, #tpu.memory_space<vmem>>, vector<1x2x8x128xf32>,
    } else {
    }
    return
  }
  func.func @transform_0(%arg0: i32, %arg1: i32) -> (i32, i32) {
    %c1_i32 = arith.constant 1 : i32
    %0 = arith.muli %arg0, %c1_i32 : i32
    %1 = arith.addi %0, %arg1 : i32
    %c0_i32 = arith.constant 0 : i32
    %2 = arith.minsi %1, %c0_i32 : i32
    %c0_i32_0 = arith.constant 0 : i32
    %c0_i32_1 = arith.constant 0 : i32
    return %2, %c0_i32_0 : i32, i32
  }
  func.func @transform_1(%arg0: i32, %arg1: i32) -> (i32, i32) {
    %c1_i32 = arith.constant 1 : i32
    %0 = arith.muli %arg0, %c1_i32 : i32
    %1 = arith.addi %0, %arg1 : i32
    %c0_i32 = arith.constant 0 : i32
    %2 = arith.minsi %1, %c0_i32 : i32
    %c0_i32_0 = arith.constant 0 : i32
    %c0_i32_1 = arith.constant 0 : i32
    return %2, %c0_i32_0 : i32, i32
  }
  func.func @transform_2(%arg0: i32, %arg1: i32) -> (i32, i32) {
    %c1_i32 = arith.constant 1 : i32
    %0 = arith.muli %arg0, %c1_i32 : i32
    %1 = arith.addi %0, %arg1 : i32
    %c0_i32 = arith.constant 0 : i32
    %2 = arith.minsi %1, %c0_i32 : i32
    %c0_i32_0 = arith.constant 0 : i32
    %c0_i32_1 = arith.constant 0 : i32
    return %2, %c0_i32_0 : i32, i32
  }
  func.func @transform_3(%arg0: i32, %arg1: i32) -> (i32, i32, i32, i32) {
    %c0_i32 = arith.constant 0 : i32
    %c0_i32_0 = arith.constant 0 : i32
    %c0_i32_1 = arith.constant 0 : i32
    %c0_i32_2 = arith.constant 0 : i32
    return %arg0, %c0_i32, %c0_i32_0, %c0_i32_1 : i32, i32, i32, i32
  }
}

</mosaic_0001>

<llo_original>
// kernel: tpu_custom_call.1
$region0: #{tpu_custom_call.1}
  #allocation0 [shape = 'u32[]', space=smem, size = 0x4, offset = 0x4, fixed_abs, tag = 'smem constant byte address 0x4 - core index']
  #allocation1 [shape = 'u32[72,128]{1,0:T(1,128)}', space=vmem, size = 0x9000, scoped, tag = 'internal scratch']
  #allocation2 [shape = 'f32[2,8,128]{2,1,0:T(8,128)}', space=vmem, size = 0x2000, scoped, tag = 'scratch operand']
  %s0 = inlined_call_operand.hbm [shape: f32[16,128], index: 0, kind: input, shape index: {}]
  %s1 = inlined_call_operand.hbm [shape: f32[16,128], index: 1, kind: input, shape index: {}]
  %s2 = inlined_call_operand.hbm [shape: f32[16,128], index: 2, kind: input, shape index: {}]
  %s3 = inlined_call_operand.hbm [shape: f32[1,2,8,128], index: 3, kind: output, shape index: {}]
  %s4 = sld [smem:[#allocation0]]
  $region42: #{tpu_custom_call.1} parent=0
    _
  %s6 = ssub.s32 1, %s4
  %s7 = scalar_select 0, %s6, %s4
  $region1: #{tpu_custom_call.1} parent=0
    #allocation3 [shape = 'u8[8192]{0}', space=vmem, size = 0x2000, scoped, tag = 'input window, operand 0, single buffered']
    #allocation4 [shape = 's32[1]{0}', space=sflag, size = 0x4, scoped, tag = 'scoped memory for tpu_custom_call.1']
    #allocation5 [shape = 's32[1]{0}', space=sflag, size = 0x4, scoped, tag = 'scoped memory for tpu_custom_call.1']
    #allocation6 [shape = 'u8[8192]{0}', space=vmem, size = 0x2000, scoped, tag = 'input window, operand 1, single buffered']
    #allocation7 [shape = 's32[1]{0}', space=sflag, size = 0x4, scoped, tag = 'scoped memory for tpu_custom_call.1']
    #allocation8 [shape = 'u8[8192]{0}', space=vmem, size = 0x2000, scoped, tag = 'input window, operand 2, single buffered']
    #allocation9 [shape = 'u8[8192]{0}', space=vmem, size = 0x2000, scoped, tag = 'output window, operand 0, single buffered']
    %8 = vsyncpa [#allocation4], 0
    %9 = vsyncpa [#allocation7], 0
    %10 = vsyncpa [#allocation5], 0
    // Predicated region
    $region2: #{tpu_custom_call.1} parent=1 // pred_check
      _
    $region3: #{tpu_custom_call.1} parent=1 // pred_check_branch
      %12 = sbr.rel (0) target = $region5
    $region4: #{tpu_custom_call.1} parent=1 // pred_region
      %s13 = sadd.s32 0, 0
      %p14 = scmp.lt.s32.totalorder %s13, 0
      %s15 = scalar_select %p14, %s13, 0
      %s16 = smul.u32 2, %s15
      %18 = vsyncadd [#allocation4], 0
      %s19 = smul.addr %s16, 8
      %s20 = scalar_lea.hbm %s0, %s19
      %s21 = sshll.u32 %s20, 4
      %s22 = int_to_ptr.hbm [resolvable:$true] %s21
      %s23 = sshll.u32 [#allocation3], 4
      %s24 = int_to_ptr.vmem [resolvable:$true] %s23
      %29 = dma.hbm_to_vmem [thread:$0]  %s22, 256, %s24, [#allocation4], 128, 128, 8
    $region5: #{tpu_custom_call.1} parent=1 // pred_fallthru
      _
    // Predicated region
    $region6: #{tpu_custom_call.1} parent=1 // pred_check
      _
    $region7: #{tpu_custom_call.1} parent=1 // pred_check_branch
      %31 = sbr.rel (0) target = $region9
    $region8: #{tpu_custom_call.1} parent=1 // pred_region
      %s32 = sadd.s32 0, 0
      %p33 = scmp.lt.s32.totalorder %s32, 0
      %s34 = scalar_select %p33, %s32, 0
      %s35 = smul.u32 2, %s34
      %37 = vsyncadd [#allocation7], 0
      %s38 = smul.addr %s35, 8
      %s39 = scalar_lea.hbm %s1, %s38
      %s40 = sshll.u32 %s39, 4
      %s41 = int_to_ptr.hbm [resolvable:$true] %s40
      %s42 = sshll.u32 [#allocation6], 4
      %s43 = int_to_ptr.vmem [resolvable:$true] %s42
      %48 = dma.hbm_to_vmem [thread:$0]  %s41, 256, %s43, [#allocation7], 128, 128, 8
    $region9: #{tpu_custom_call.1} parent=1 // pred_fallthru
      _
    // Predicated region
    $region10: #{tpu_custom_call.1} parent=1 // pred_check
      _
    $region11: #{tpu_custom_call.1} parent=1 // pred_check_branch
      %50 = sbr.rel (0) target = $region13
    $region12: #{tpu_custom_call.1} parent=1 // pred_region
      %s51 = sadd.s32 0, 0
      %p52 = scmp.lt.s32.totalorder %s51, 0
      %s53 = scalar_select %p52, %s51, 0
      %s54 = smul.u32 2, %s53
      %56 = vsyncadd [#allocation7], 0
      %s57 = smul.addr %s54, 8
      %s58 = scalar_lea.hbm %s2, %s57
      %s59 = sshll.u32 %s58, 4
      %s60 = int_to_ptr.hbm [resolvable:$true] %s59
      %s61 = sshll.u32 [#allocation8], 4
      %s62 = int_to_ptr.vmem [resolvable:$true] %s61
      %67 = dma.hbm_to_vmem [thread:$0]  %s60, 256, %s62, [#allocation7], 128, 128, 8
    $region13: #{tpu_custom_call.1} parent=1 // pred_fallthru
      _
    // Predicated region
    $region14: #{tpu_custom_call.1} parent=1 // pred_check
      _
    $region15: #{tpu_custom_call.1} parent=1 // pred_check_branch
      %69 = sbr.rel (0) target = $region17
    $region16: #{tpu_custom_call.1} parent=1 // pred_region
      %71 = dma.done [#allocation4], 256
    $region17: #{tpu_custom_call.1} parent=1 // pred_fallthru
      _
    // Predicated region
    $region18: #{tpu_custom_call.1} parent=1 // pred_check
      _
    $region19: #{tpu_custom_call.1} parent=1 // pred_check_branch
      %73 = sbr.rel (0) target = $region21
    $region20: #{tpu_custom_call.1} parent=1 // pred_region
      %75 = dma.done [#allocation7], 256
    $region21: #{tpu_custom_call.1} parent=1 // pred_fallthru
      _
    // Predicated region
    $region22: #{tpu_custom_call.1} parent=1 // pred_check
      _
    $region23: #{tpu_custom_call.1} parent=1 // pred_check_branch
      %77 = sbr.rel (0) target = $region25
    $region24: #{tpu_custom_call.1} parent=1 // pred_region
      %79 = dma.done [#allocation7], 256
    $region25: #{tpu_custom_call.1} parent=1 // pred_fallthru
      _
    %s80 = sadd.s32 0, 0
    %p81 = scmp.lt.s32.totalorder %s80, 0
    %s82 = scalar_select %p81, %s80, 0
    %s83 = smul.u32 2, %s82
    %s84 = sadd.s32 0, 0
    %p85 = scmp.lt.s32.totalorder %s84, 0
    %s86 = scalar_select %p85, %s84, 0
    %s87 = smul.u32 2, %s86
    %s88 = sadd.s32 0, 0
    %p89 = scmp.lt.s32.totalorder %s88, 0
    %s90 = scalar_select %p89, %s88, 0
    %s91 = smul.u32 2, %s90
    %p92 = scmp.eq.s32.totalorder 0, 0
    // Predicated region
    $region26: #{tpu_custom_call.1} parent=1 // pred_check
      %p93 = pneg %p92
    $region27: #{tpu_custom_call.1} parent=1 // pred_check_branch
      %95 = sbr.rel (%p93) target = $region29
    $region28: #{tpu_custom_call.1} parent=1 // pred_region
      %96 = vst [vmem:[#allocation2] sm:$0xff] 0.0
      %97 = vst [vmem:[#allocation2 + $0x8] sm:$0xff] 0.0
    $region29: #{tpu_custom_call.1} parent=1 // pred_fallthru
      _
    %v98 = vld [vmem:[#allocation3] sm:$0xff]
    %v99 = vld [vmem:[#allocation3 + $0x8] sm:$0xff]
    %v100 = vld [vmem:[#allocation6] sm:$0xff]
    %v101 = vld [vmem:[#allocation6 + $0x8] sm:$0xff]
    %v102 = vld [vmem:[#allocation8] sm:$0xff]
    %v103 = vld [vmem:[#allocation8 + $0x8] sm:$0xff]
    %v104 = vsub.f32 %v98, %v100
    %v105 = vsub.f32 %v99, %v101
    %v106 = vmul.f32 %v102, %v104
    %v107 = vmul.f32 %v103, %v105
    %v108 = vmul.f32 %v106, %v104
    %v109 = vmul.f32 %v107, %v105
    %v110 = vld [vmem:[#allocation2] sm:$0xff]
    %v111 = vadd.f32 %v108, %v109
    %v112 = vadd.f32 %v110, %v111
    %113 = vst [vmem:[#allocation2] sm:$0xff] %v112
    %s114 = scalar_lea.vmem [#allocation2], 8
    %v115 = vld [vmem:[%s114] sm:$0xff]
    %v116 = vadd.f32 %v102, %v103
    %v117 = vadd.f32 %v115, %v116
    %118 = vst [vmem:[%s114] sm:$0xff] %v117
    // Predicated region
    $region30: #{tpu_custom_call.1} parent=1 // pred_check
      %p119 = pneg %p92
    $region31: #{tpu_custom_call.1} parent=1 // pred_check_branch
      %121 = sbr.rel (%p119) target = $region33
    $region32: #{tpu_custom_call.1} parent=1 // pred_region
      %v122 = vld [vmem:[#allocation2] sm:$0xff]
      %v123 = vld [vmem:[#allocation2 + $0x8] sm:$0xff]
      %124 = vst [vmem:[#allocation9] sm:$0xff] %v122
      %125 = vst [vmem:[#allocation9 + $0x8] sm:$0xff] %v123
    $region33: #{tpu_custom_call.1} parent=1 // pred_fallthru
      _
    // Predicated region
    $region34: #{tpu_custom_call.1} parent=1 // pred_check
      _
    $region35: #{tpu_custom_call.1} parent=1 // pred_check_branch
      %127 = sbr.rel (0) target = $region37
    $region36: #{tpu_custom_call.1} parent=1 // pred_region
      %129 = vsyncadd [#allocation5], 0
      %s130 = sshll.u32 [#allocation9], 4
      %s131 = int_to_ptr.vmem [resolvable:$true] %s130
      %s132 = sshll.u32 %s3, 4
      %s133 = int_to_ptr.hbm [resolvable:$true] %s132
      %138 = dma.vmem_to_hbm [thread:$0]  %s131, 256, %s133, [#allocation5], 128, 128, 8
    $region37: #{tpu_custom_call.1} parent=1 // pred_fallthru
      _
    // Predicated region
    $region38: #{tpu_custom_call.1} parent=1 // pred_check
      _
    $region39: #{tpu_custom_call.1} parent=1 // pred_check_branch
      %140 = sbr.rel (0) target = $region41
    $region40: #{tpu_custom_call.1} parent=1 // pred_region
      %142 = dma.done [#allocation5], 256
    $region41: #{tpu_custom_call.1} parent=1 // pred_fallthru
      _
    %143 = vsyncpa [#allocation4], 1
    %144 = vsyncpa [#allocation7], 1
    %145 = vsyncpa [#allocation5], 1

</llo_original>
